<compile_context>
chip_gen: v6e
topology: v6e:2x2x1
jax: 0.10.0
libtpu: 0.0.40
codegen_flags: <defaults>
</compile_context>

<pallas_src>
import functools

import jax
import jax.numpy as jnp
from jax.experimental import pallas as pl
from jax.experimental.pallas import tpu as pltpu

BN_EPS = 1e-5
LANES = 128
_MAX_TK = 2048   # contraction tile: typical ResNet KD (576/1152/2304) is 1-2 tiles


def _round_up(x, m):
    return (x + m - 1) // m * m


@functools.lru_cache(maxsize=None)
def _vmem_budgets():
    """(vmem_limit_bytes, per-grid-step tile budget), sized per TPU generation."""
    try:
        cap = int(pltpu.get_tpu_info().vmem_capacity_bytes)
        if cap <= 0:
            raise ValueError(cap)
    except Exception:  # unknown / emulated backend -> v7x-safe (64 MiB/TC) default
        cap = 64 * 1024 * 1024
    limit = min(cap * 3 // 4, 112 * 1024 * 1024)   # ~96 MiB on v5e/v6e, ~48 MiB on v7x
    budget = max(limit // 3, 8 * 1024 * 1024)
    return limit, budget


def _auto_tile_m(m, tk, num_k, coutp, in_bytes, conv_bytes, budget):
    """Pick the M tile from the per-grid-step VMEM working set."""
    fixed = 2 * tk * coutp * in_bytes + 4 * 8 * coutp * 4   # resident weights + tiny rows
    per_row = 2 * tk * in_bytes + 2 * coutp * conv_bytes    # dbl-buffered patches + conv out
    if num_k > 1:
        per_row += coutp * 4                                # f32 accumulator scratch
    tm = (budget - fixed) // max(per_row, 1)
    tm = max(256, tm // 256 * 256)                          # MXU / bf16-packed M granularity
    tm = min(tm, 4096)
    if tm >= m:
        tm = _round_up(m, 16)
    return int(tm)


def _pass2_tile_m(num_m, tile_m, coutp, conv_bytes, budget):
    """Pass 2 is pure elementwise: take the largest tile that divides m_pad."""
    per_row = 2 * coutp * (conv_bytes + 4)                  # dbl-buffered input + f32 output
    for g in range(num_m, 0, -1):
        if num_m % g == 0 and tile_m * g * per_row <= budget:
            return tile_m * g
    return tile_m


# --------------------------------------------------------------------------- #
# Kernels
# --------------------------------------------------------------------------- #
def _emit_conv_and_stats(y, b_ref, conv_ref, stats_ref):
    """Store conv = y + bias; emit per-tile per-channel (sum(y), sum(y*y)).

    Stats use the pre-bias value y, so zero-padded rows contribute exactly 0.
    """
    conv_ref[...] = (y + b_ref[...]).astype(conv_ref.dtype)
    s = jnp.sum(y, axis=0, keepdims=True)
    q = jnp.sum(y * y, axis=0, keepdims=True)
    row = jax.lax.broadcasted_iota(jnp.int32, (8, y.shape[1]), 0)
    stats_ref[...] = jnp.where(row == 0, s, jnp.where(row == 1, q, 0.0))


def _conv_stats_kernel(p_ref, w_ref, b_ref, conv_ref, stats_ref, *acc_refs,
                       num_k):
    """Pass 1: conv tile (accumulated over the KD grid axis) + BN partials."""
    if num_k == 1:
        y = jnp.dot(p_ref[...], w_ref[...], preferred_element_type=jnp.float32)
        _emit_conv_and_stats(y, b_ref, conv_ref, stats_ref)
        return

    acc_ref = acc_refs[0]
    k = pl.program_id(1)              # top-level only (never inside pl.when)
    k_last = pl.num_programs(1) - 1

    @pl.when(k == 0)
    def _():
        acc_ref[...] = jnp.zeros_like(acc_ref)

    acc_ref[...] += jnp.dot(p_ref[...], w_ref[...],
                            preferred_element_type=jnp.float32)

    @pl.when(k == k_last)
    def _():
        _emit_conv_and_stats(acc_ref[...], b_ref, conv_ref, stats_ref)


def _fused_conv_bn_relu_kernel(p_ref, w_ref, b_ref, g_ref, beta_ref, o_ref,
                               *acc_refs, num_k, inv_m):
    """Single-M-tile fast path: conv + batch stats + BN + ReLU in one kernel."""
    def _finalize(y):
        s = jnp.sum(y, axis=0, keepdims=True)
        q = jnp.sum(y * y, axis=0, keepdims=True)
        mean_y = s * inv_m
        var = jnp.maximum(q * inv_m - mean_y * mean_y, 0.0)
        inv_std = jax.lax.rsqrt(var + BN_EPS)
        scale = g_ref[...] * inv_std
        shift = beta_ref[...] - (mean_y + b_ref[...]) * scale
        conv = y + b_ref[...]
        o_ref[...] = jnp.maximum(conv * scale + shift, 0.0).astype(o_ref.dtype)

    if num_k == 1:
        _finalize(jnp.dot(p_ref[...], w_ref[...],
                          preferred_element_type=jnp.float32))
        return

    acc_ref = acc_refs[0]
    k = pl.program_id(0)
    k_last = pl.num_programs(0) - 1

    @pl.when(k == 0)
    def _():
        acc_ref[...] = jnp.zeros_like(acc_ref)

    acc_ref[...] += jnp.dot(p_ref[...], w_ref[...],
                            preferred_element_type=jnp.float32)

    @pl.when(k == k_last)
    def _():
        _finalize(acc_ref[...])


def _bn_relu_kernel(conv_ref, scale_ref, shift_ref, o_ref):
    x = conv_ref[...].astype(jnp.float32)
    o_ref[...] = jnp.maximum(x * scale_ref[...] + shift_ref[...], 0.0)


# --------------------------------------------------------------------------- #
# Wrapper
# --------------------------------------------------------------------------- #
def _im2col_nhwc(x_nhwc, kernel_size, stride, padding, dilation):
    """Extract conv patches; returns (N*Hout*Wout, K*K*Cin) in (kh, kw, cin) order."""
    n, h, w, cin = x_nhwc.shape
    k = kernel_size
    hout = (h + 2 * padding - dilation * (k - 1) - 1) // stride + 1
    wout = (w + 2 * padding - dilation * (k - 1) - 1) // stride + 1
    xp = jnp.pad(x_nhwc, ((0, 0), (padding, padding), (padding, padding), (0, 0)))
    cols = []
    for kh in range(k):
        for kw in range(k):
            h0 = kh * dilation
            w0 = kw * dilation
            cols.append(
                xp[:, h0:h0 + (hout - 1) * stride + 1:stride,
                      w0:w0 + (wout - 1) * stride + 1:stride, :])
    patches = jnp.stack(cols, axis=3)              # (N, Hout, Wout, K*K, Cin)
    return patches.reshape(n * hout * wout, k * k * cin), hout, wout


@functools.partial(jax.jit, static_argnames=("kernel_size", "stride", "padding",
                                             "dilation", "tile_m", "matmul_dtype",
                                             "max_tk", "data_format"))
def basic_block_forward(x, conv_w, conv_b, bn_gamma, bn_beta, *,
                        kernel_size, stride=1, padding=0, dilation=1,
                        tile_m=None, matmul_dtype=jnp.bfloat16,
                        max_tk=_MAX_TK, data_format="NCHW"):
    """Conv2d(+bias) -> BatchNorm2d (training batch stats) -> ReLU.

    x: (N, Cin, H, W) when data_format == "NCHW" (PyTorch layout), else NHWC.
    conv_w: (Cout, Cin, K, K); conv_b / bn_gamma / bn_beta: (Cout,).
    """
    if data_format == "NCHW":
        x_nhwc = jnp.transpose(x, (0, 2, 3, 1))
    else:
        x_nhwc = x
    x_nhwc = x_nhwc.astype(jnp.float32)
    n = x_nhwc.shape[0]
    cout = conv_w.shape[0]

    # TODO(synk): stream the NHWC input in-kernel (shifted accumulated matmuls)
    # instead of materializing the im2col patch matrix below.
    patches, hout, wout = _im2col_nhwc(x_nhwc, kernel_size, stride, padding,
                                       dilation)
    m, kd = patches.shape

    # ---- lane/sublane-friendly padded shapes --------------------------------
    coutp = _round_up(cout, LANES)                 # lane-dense output / weight N dim
    if kd <= max_tk:
        num_k = 1
        tk = kd_pad = _round_up(kd, 16)            # minimal KD padding (full-dim block)
    else:
        num_k = -(-kd // max_tk)
        tk = _round_up(-(-kd // num_k), LANES)     # 128-granular contraction tiles
        kd_pad = tk * num_k

    mm_dtype = jnp.dtype(matmul_dtype)
    in_bytes = mm_dtype.itemsize
    conv_dtype = mm_dtype if mm_dtype == jnp.dtype(jnp.bfloat16) else jnp.dtype(jnp.float32)
    conv_bytes = jnp.dtype(conv_dtype).itemsize

    vmem_limit, tile_budget = _vmem_budgets()
    if tile_m is None:
        tile_m = _auto_tile_m(m, tk, num_k, coutp, in_bytes, conv_bytes,
                              tile_budget)
    tile_m = max(16, _round_up(int(tile_m), 16))
    tile_m = min(tile_m, _round_up(m, 16))
    m_pad = _round_up(m, tile_m)
    num_m = m_pad // tile_m

    patches = jnp.pad(patches.astype(mm_dtype),
                      ((0, m_pad - m), (0, kd_pad - kd)))

    # (Cout, Cin, Kh, Kw) -> (Kh*Kw*Cin, Cout) matching patch order, then pad.
    w_mat = jnp.transpose(conv_w, (2, 3, 1, 0)).reshape(kd, cout)
    w_mat = jnp.pad(w_mat, ((0, kd_pad - kd), (0, coutp - cout))).astype(mm_dtype)
    b_row = jnp.pad(conv_b.astype(jnp.float32), (0, coutp - cout)).reshape(1, coutp)
    gamma_row = jnp.pad(bn_gamma.astype(jnp.float32), (0, coutp - cout)).reshape(1, coutp)
    beta_row = jnp.pad(bn_beta.astype(jnp.float32), (0, coutp - cout)).reshape(1, coutp)
    inv_m = 1.0 / float(m)

    acc_scratch = [] if num_k == 1 else [pltpu.VMEM((tile_m, coutp), jnp.float32)]

    if num_m == 1:
        # ---- fused path: one pallas_call, conv intermediate never hits HBM ---
        out_flat = pl.pallas_call(
            functools.partial(_fused_conv_bn_relu_kernel, num_k=num_k,
                              inv_m=inv_m),
            out_shape=jax.ShapeDtypeStruct((m_pad, coutp), jnp.float32),
            grid=(num_k,),
            in_specs=[
                pl.BlockSpec((tile_m, tk), lambda k: (0, k)),
                pl.BlockSpec((tk, coutp), lambda k: (k, 0)),
                pl.BlockSpec((1, coutp), lambda k: (0, 0)),
                pl.BlockSpec((1, coutp), lambda k: (0, 0)),
                pl.BlockSpec((1, coutp), lambda k: (0, 0)),
            ],
            out_specs=pl.BlockSpec((tile_m, coutp), lambda k: (0, 0)),
            scratch_shapes=acc_scratch,
            compiler_params=pltpu.CompilerParams(
                dimension_semantics=("arbitrary",),
                vmem_limit_bytes=vmem_limit),
        )(patches, w_mat, b_row, gamma_row, beta_row)
    else:
        # ---- pass 1: conv + bias, per-tile (pre-bias) BN partial stats -------
        # With num_k == 1 the weight block index is constant -> weights stay
        # VMEM-resident (DMA'd once per TensorCore).
        conv_buf, part_stats = pl.pallas_call(
            functools.partial(_conv_stats_kernel, num_k=num_k),
            out_shape=(jax.ShapeDtypeStruct((m_pad, coutp), conv_dtype),
                       jax.ShapeDtypeStruct((num_m * 8, coutp), jnp.float32)),
            grid=(num_m, num_k),
            in_specs=[
                pl.BlockSpec((tile_m, tk), lambda i, k: (i, k)),
                pl.BlockSpec((tk, coutp), lambda i, k: (k, 0)),
                pl.BlockSpec((1, coutp), lambda i, k: (0, 0)),
            ],
            out_specs=(
                pl.BlockSpec((tile_m, coutp), lambda i, k: (i, 0)),
                pl.BlockSpec((8, coutp), lambda i, k: (i, 0)),
            ),
            scratch_shapes=acc_scratch,
            compiler_params=pltpu.CompilerParams(
                dimension_semantics=("parallel", "arbitrary"),
                vmem_limit_bytes=vmem_limit),
        )(patches, w_mat, b_row)

        # ---- finalize BN stats (tiny (Coutp,) vectors; biased variance) ------
        part = part_stats.reshape(num_m, 8, coutp)
        sum_y = jnp.sum(part[:, 0, :], axis=0)
        ssq_y = jnp.sum(part[:, 1, :], axis=0)
        mean_y = sum_y * inv_m
        var = jnp.maximum(ssq_y * inv_m - mean_y * mean_y, 0.0)
        inv_std = jax.lax.rsqrt(var + BN_EPS)
        scale = (gamma_row[0] * inv_std).reshape(1, coutp)
        shift = (beta_row[0] - (mean_y + b_row[0]) * gamma_row[0] * inv_std
                 ).reshape(1, coutp)

        # ---- pass 2: normalize + ReLU (bigger, independent M tiles) ----------
        tile_m2 = _pass2_tile_m(num_m, tile_m, coutp, conv_bytes, tile_budget)
        out_flat = pl.pallas_call(
            _bn_relu_kernel,
            out_shape=jax.ShapeDtypeStruct((m_pad, coutp), jnp.float32),
            grid=(m_pad // tile_m2,),
            in_specs=[
                pl.BlockSpec((tile_m2, coutp), lambda i: (i, 0)),
                pl.BlockSpec((1, coutp), lambda i: (0, 0)),
                pl.BlockSpec((1, coutp), lambda i: (0, 0)),
            ],
            out_specs=pl.BlockSpec((tile_m2, coutp), lambda i: (i, 0)),
            compiler_params=pltpu.CompilerParams(
                dimension_semantics=("parallel",),
                vmem_limit_bytes=vmem_limit),
        )(conv_buf, scale, shift)

    out_nhwc = out_flat[:m, :cout].reshape(n, hout, wout, cout)
    if data_format == "NCHW":
        return jnp.transpose(out_nhwc, (0, 3, 1, 2))
    return out_nhwc


# --------------------------------------------------------------------------- #
# Reference + tests
# --------------------------------------------------------------------------- #
def _reference(x_nchw, conv_w, conv_b, bn_gamma, bn_beta,
               kernel_size, stride, padding, dilation, conv_dtype=jnp.float32):
    """Pure-JAX reference (NCHW conv + training-mode BN + ReLU)."""
    conv = jax.lax.conv_general_dilated(
        x_nchw.astype(conv_dtype), conv_w.astype(conv_dtype),
        window_strides=(stride, stride),
        padding=((padding, padding), (padding, padding)),
        rhs_dilation=(dilation, dilation),
        dimension_numbers=("NCHW", "OIHW", "NCHW"),
        preferred_element_type=jnp.float32)
    conv = conv + conv_b.reshape(1, -1, 1, 1).astype(jnp.float32)
    mean = jnp.mean(conv, axis=(0, 2, 3), keepdims=True)
    var = jnp.mean((conv - mean) ** 2, axis=(0, 2, 3), keepdims=True)
    xhat = (conv - mean) / jnp.sqrt(var + BN_EPS)
    y = bn_gamma.reshape(1, -1, 1, 1) * xhat + bn_beta.reshape(1, -1, 1, 1)
    return jnp.maximum(y, 0.0)


if __name__ == "__main__":
    # Module config: BasicBlock(in_channels=4, out_channels=8, kernel_size=3,
    #                           stride=1, padding=1, dilation=1, bias=True)
    N, CIN, H, W = 2, 4, 16, 16
    COUT, K = 8, 3

    key = jax.random.PRNGKey(0)
    kx, kw, kb = jax.random.split(key, 3)
    x = jax.random.normal(kx, (N, CIN, H, W), dtype=jnp.float32)

    fan_in = CIN * K * K
    bound = 1.0 / (fan_in ** 0.5)
    conv_w = jax.random.uniform(kw, (COUT, CIN, K, K), jnp.float32,
                                minval=-bound, maxval=bound)
    conv_b = jax.random.uniform(kb, (COUT,), jnp.float32,
                                minval=-bound, maxval=bound)
    bn_gamma = jnp.ones((COUT,), jnp.float32)
    bn_beta = jnp.zeros((COUT,), jnp.float32)

    def check(out, ref, atol, rtol, name):
        assert out.shape == ref.shape, (name, out.shape, ref.shape)
        err = float(jnp.max(jnp.abs(out - ref)))
        assert jnp.allclose(out, ref, atol=atol, rtol=rtol), (name, err)

    ref_f32 = _reference(x, conv_w, conv_b, bn_gamma, bn_beta, K, 1, 1, 1)
    ref_bf16 = _reference(x, conv_w, conv_b, bn_gamma, bn_beta, K, 1, 1, 1,
                          conv_dtype=jnp.bfloat16)

    # (a) default bf16 matmul, auto tile -> fused single-pallas_call path.
    out_a = jax.block_until_ready(basic_block_forward(
        x, conv_w, conv_b, bn_gamma, bn_beta,
        kernel_size=K, stride=1, padding=1, dilation=1))
    check(out_a, ref_bf16, 3e-3, 3e-3, "bf16-fused-vs-bf16ref")
    check(out_a, ref_f32, 6e-2, 6e-2, "bf16-fused-vs-f32ref")

    # (b) f32 path with a tile that does NOT divide M: two-pass path, padded
    #     rows, multi-tile BN-stat combination.
    out_b = jax.block_until_ready(basic_block_forward(
        x, conv_w, conv_b, bn_gamma, bn_beta,
        kernel_size=K, stride=1, padding=1, dilation=1,
        tile_m=192, matmul_dtype=jnp.float32))
    check(out_b, ref_f32, 1e-4, 1e-4, "f32-two-pass")

    # (c) strided geometry (fused path, f32).
    out_c = jax.block_until_ready(basic_block_forward(
        x, conv_w, conv_b, bn_gamma, bn_beta,
        kernel_size=K, stride=2, padding=1, dilation=1,
        matmul_dtype=jnp.float32))
    ref_c = _reference(x, conv_w, conv_b, bn_gamma, bn_beta, K, 2, 1, 1)
    check(out_c, ref_c, 1e-4, 1e-4, "f32-stride2")

    # (d) force a split contraction dim -> accumulator-scratch path.
    out_d = jax.block_until_ready(basic_block_forward(
        x, conv_w, conv_b, bn_gamma, bn_beta,
        kernel_size=K, stride=1, padding=1, dilation=1,
        tile_m=192, matmul_dtype=jnp.float32, max_tk=16))
    check(out_d, ref_f32, 1e-4, 1e-4, "f32-split-kd")

    # (e) bf16 two-pass path (bf16 conv intermediate in HBM).
    out_e = jax.block_until_ready(basic_block_forward(
        x, conv_w, conv_b, bn_gamma, bn_beta,
        kernel_size=K, stride=1, padding=1, dilation=1, tile_m=128))
    check(out_e, ref_f32, 6e-2, 6e-2, "bf16-two-pass")

    # (f) NHWC in / NHWC out (skips the wrapper-side layout transposes).
    out_f = jax.block_until_ready(basic_block_forward(
        jnp.transpose(x, (0, 2, 3, 1)), conv_w, conv_b, bn_gamma, bn_beta,
        kernel_size=K, stride=1, padding=1, dilation=1,
        matmul_dtype=jnp.float32, data_format="NHWC"))
    check(out_f, jnp.transpose(ref_f32, (0, 2, 3, 1)), 1e-4, 1e-4, "nhwc")

    print("KERNEL_OK")
</pallas_src>

<mosaic_0001>
module attributes {stable_mosaic.version = 11 : i64} {
  func.func @_fused_conv_bn_relu_kernel(%arg0: i32, %arg1: memref<512x48xbf16, #tpu.memory_space<vmem>>, %arg2: memref<48x128xbf16, #tpu.memory_space<vmem>>, %arg3: memref<1x128xf32, #tpu.memory_space<vmem>>, %arg4: memref<1x128xf32, #tpu.memory_space<vmem>>, %arg5: memref<1x128xf32, #tpu.memory_space<vmem>>, %arg6: memref<512x128xf32, #tpu.memory_space<vmem>>) attributes {dimension_semantics = [#tpu.dimension_semantics<arbitrary>], iteration_bounds = array<i64: 1>, scalar_prefetch = 0 : i64, scratch_operands = 0 : i64, tpu.core_type = #tpu.core_type<tc>, window_params = [{transform_indices = @transform_0, window_bounds = array<i64: 512, 48>}, {transform_indices = @transform_1, window_bounds = array<i64: 48, 128>}, {pipeline_mode = #tpu.pipeline_mode<synchronous>, transform_indices = @transform_2, window_bounds = array<i64: 1, 128>}, {pipeline_mode = #tpu.pipeline_mode<synchronous>, transform_indices = @transform_3, window_bounds = array<i64: 1, 128>}, {pipeline_mode = #tpu.pipeline_mode<synchronous>, transform_indices = @transform_4, window_bounds = array<i64: 1, 128>}, {pipeline_mode = #tpu.pipeline_mode<synchronous>, transform_indices = @transform_5, window_bounds = array<i64: 512, 128>}]} {
    %c0 = arith.constant 0 : index
    %c0_0 = arith.constant 0 : index
    %0 = vector.load %arg1[%c0, %c0_0] : memref<512x48xbf16, #tpu.memory_space<vmem>>, vector<512x48xbf16>
    %c0_1 = arith.constant 0 : index
    %c0_2 = arith.constant 0 : index
    %1 = vector.load %arg2[%c0_1, %c0_2] : memref<48x128xbf16, #tpu.memory_space<vmem>>, vector<48x128xbf16>
    %cst = arith.constant dense<0.000000e+00> : vector<512x128xf32>
    %2 = tpu.matmul %0, %1, %cst {dimension_numbers = #tpu.dot_dimension_numbers<[1], [0], [0], [1], [0, 0, 1, 1], [], []>} : vector<512x48xbf16>, vector<48x128xbf16>, vector<512x128xf32> -> vector<512x128xf32>
    %cst_3 = arith.constant dense<0.000000e+00> : vector<128xf32>
    %3 = vector.multi_reduction <add>, %2, %cst_3 [0] : vector<512x128xf32> to vector<128xf32>
    %4 = vector.shape_cast %3 : vector<128xf32> to vector<1x128xf32>
    %5 = arith.mulf %2, %2 : vector<512x128xf32>
    %cst_4 = arith.constant dense<0.000000e+00> : vector<128xf32>
    %6 = vector.multi_reduction <add>, %5, %cst_4 [0] : vector<512x128xf32> to vector<128xf32>
    %7 = vector.shape_cast %6 : vector<128xf32> to vector<1x128xf32>
    %cst_5 = arith.constant 0.001953125 : f32
    %8 = vector.broadcast %cst_5 : f32 to vector<1x128xf32>
    %9 = arith.mulf %4, %8 : vector<1x128xf32>
    %cst_6 = arith.constant 0.001953125 : f32
    %10 = vector.broadcast %cst_6 : f32 to vector<1x128xf32>
    %11 = arith.mulf %7, %10 : vector<1x128xf32>
    %12 = arith.mulf %9, %9 : vector<1x128xf32>
    %13 = arith.subf %11, %12 : vector<1x128xf32>
    %cst_7 = arith.constant 0.000000e+00 : f32
    %14 = vector.broadcast %cst_7 : f32 to vector<1x128xf32>
    %15 = arith.maximumf %13, %14 : vector<1x128xf32>
    %cst_8 = arith.constant 9.99999974E-6 : f32
    %16 = vector.broadcast %cst_8 : f32 to vector<1x128xf32>
    %17 = arith.addf %15, %16 : vector<1x128xf32>
    %18 = math.rsqrt %17 : vector<1x128xf32>
    %c0_9 = arith.constant 0 : index
    %c0_10 = arith.constant 0 : index
    %19 = vector.load %arg4[%c0_9, %c0_10] : memref<1x128xf32, #tpu.memory_space<vmem>>, vector<1x128xf32>
    %20 = arith.mulf %19, %18 : vector<1x128xf32>
    %c0_11 = arith.constant 0 : index
    %c0_12 = arith.constant 0 : index
    %21 = vector.load %arg5[%c0_11, %c0_12] : memref<1x128xf32, #tpu.memory_space<vmem>>, vector<1x128xf32>
    %c0_13 = arith.constant 0 : index
    %c0_14 = arith.constant 0 : index
    %22 = vector.load %arg3[%c0_13, %c0_14] : memref<1x128xf32, #tpu.memory_space<vmem>>, vector<1x128xf32>
    %23 = arith.addf %9, %22 : vector<1x128xf32>
    %24 = arith.mulf %23, %20 : vector<1x128xf32>
    %25 = arith.subf %21, %24 : vector<1x128xf32>
    %c0_15 = arith.constant 0 : index
    %c0_16 = arith.constant 0 : index
    %26 = vector.load %arg3[%c0_15, %c0_16] : memref<1x128xf32, #tpu.memory_space<vmem>>, vector<1x128xf32>
    %27 = vector.broadcast %26 : vector<1x128xf32> to vector<512x128xf32>
    %28 = arith.addf %2, %27 : vector<512x128xf32>
    %29 = vector.broadcast %20 : vector<1x128xf32> to vector<512x128xf32>
    %30 = arith.mulf %28, %29 : vector<512x128xf32>
    %31 = vector.broadcast %25 : vector<1x128xf32> to vector<512x128xf32>
    %32 = arith.addf %30, %31 : vector<512x128xf32>
    %cst_17 = arith.constant 0.000000e+00 : f32
    %33 = vector.broadcast %cst_17 : f32 to vector<512x128xf32>
    %34 = arith.maximumf %32, %33 : vector<512x128xf32>
    %c0_18 = arith.constant 0 : index
    %c0_19 = arith.constant 0 : index
    %35 = vector.load %arg6[%c0_18, %c0_19] : memref<512x128xf32, #tpu.memory_space<vmem>>, vector<512x128xf32>
    tpu.vector_store %arg6[%c0_18, %c0_19], %34 {strides = array<i32>} : memref<512x128xf32, #tpu.memory_space<vmem>>, vector<512x128xf32>,
    return
  }
  func.func @transform_0(%arg0: i32) -> (i32, i32) {
    %c0_i32 = arith.constant 0 : i32
    %c0_i32_0 = arith.constant 0 : i32
    return %c0_i32, %arg0 : i32, i32
  }
  func.func @transform_1(%arg0: i32) -> (i32, i32) {
    %c0_i32 = arith.constant 0 : i32
    %c0_i32_0 = arith.constant 0 : i32
    return %arg0, %c0_i32 : i32, i32
  }
  func.func @transform_2(%arg0: i32) -> (i32, i32) {
    %c0_i32 = arith.constant 0 : i32
    %c0_i32_0 = arith.constant 0 : i32
    %c0_i32_1 = arith.constant 0 : i32
    return %c0_i32, %c0_i32_0 : i32, i32
  }
  func.func @transform_3(%arg0: i32) -> (i32, i32) {
    %c0_i32 = arith.constant 0 : i32
    %c0_i32_0 = arith.constant 0 : i32
    %c0_i32_1 = arith.constant 0 : i32
    return %c0_i32, %c0_i32_0 : i32, i32
  }
  func.func @transform_4(%arg0: i32) -> (i32, i32) {
    %c0_i32 = arith.constant 0 : i32
    %c0_i32_0 = arith.constant 0 : i32
    %c0_i32_1 = arith.constant 0 : i32
    return %c0_i32, %c0_i32_0 : i32, i32
  }
  func.func @transform_5(%arg0: i32) -> (i32, i32) {
    %c0_i32 = arith.constant 0 : i32
    %c0_i32_0 = arith.constant 0 : i32
    %c0_i32_1 = arith.constant 0 : i32
    return %c0_i32, %c0_i32_0 : i32, i32
  }
}

</mosaic_0001>

<llo_original>
// kernel: basic_block_forward.1
$region0: #{basic_block_forward.1}
  #allocation0 [shape = 'u32[]', space=smem, size = 0x4, offset = 0x4, fixed_abs, tag = 'smem constant byte address 0x4 - core index']
  #allocation1 [shape = 'u32[144,128]{1,0:T(1,128)}', space=vmem, size = 0x12000, scoped, tag = 'internal scratch']
  %s0 = inlined_call_operand.vmem [shape: bf16[512,48], index: 0, kind: input, shape index: {}]
  %s1 = inlined_call_operand.vmem [shape: bf16[48,128], index: 1, kind: input, shape index: {}]
  %s2 = inlined_call_operand.vmem [shape: f32[1,128], index: 2, kind: input, shape index: {}]
  %s3 = inlined_call_operand.vmem [shape: f32[1,128], index: 3, kind: input, shape index: {}]
  %s4 = inlined_call_operand.vmem [shape: f32[1,128], index: 4, kind: input, shape index: {}]
  %s5 = inlined_call_operand.vmem [shape: f32[512,128], index: 5, kind: output, shape index: {}]
  %s6 = sld [smem:[#allocation0]]
  $region30: #{basic_block_forward.1} parent=0
    _
  %s8 = ssub.s32 1, %s6
  %s9 = scalar_select 0, %s8, %s6
  // Predicated region
  $region2: #{basic_block_forward.1} parent=0 // pred_check
    _
  $region3: #{basic_block_forward.1} parent=0 // pred_check_branch
    %11 = sbr.rel (0) target = $region5
  $region4: #{basic_block_forward.1} parent=0 // pred_region
    _
  $region5: #{basic_block_forward.1} parent=0 // pred_fallthru
    _
  // Predicated region
  $region6: #{basic_block_forward.1} parent=0 // pred_check
    _
  $region7: #{basic_block_forward.1} parent=0 // pred_check_branch
    %13 = sbr.rel (0) target = $region9
  $region8: #{basic_block_forward.1} parent=0 // pred_region
    _
  $region9: #{basic_block_forward.1} parent=0 // pred_fallthru
    _
  // Predicated region
  $region10: #{basic_block_forward.1} parent=0 // pred_check
    _
  $region11: #{basic_block_forward.1} parent=0 // pred_check_branch
    %15 = sbr.rel (0) target = $region13
  $region12: #{basic_block_forward.1} parent=0 // pred_region
    _
  $region13: #{basic_block_forward.1} parent=0 // pred_fallthru
    _
  // Predicated region
  $region14: #{basic_block_forward.1} parent=0 // pred_check
    _
  $region15: #{basic_block_forward.1} parent=0 // pred_check_branch
    %17 = sbr.rel (0) target = $region17
  $region16: #{basic_block_forward.1} parent=0 // pred_region
    _
  $region17: #{basic_block_forward.1} parent=0 // pred_fallthru
    _
  // Predicated region
  $region18: #{basic_block_forward.1} parent=0 // pred_check
    _
  $region19: #{basic_block_forward.1} parent=0 // pred_check_branch
    %19 = sbr.rel (0) target = $region21
  $region20: #{basic_block_forward.1} parent=0 // pred_region
    _
  $region21: #{basic_block_forward.1} parent=0 // pred_fallthru
    _
  %v21 = vld [vmem:[%s0] sm:$0xf]
  %v22 = vld [vmem:[%s0 + $0x4] sm:$0xf]
  %v23 = vld [vmem:[%s0 + $0x8] sm:$0xf]
  %v24 = vld [vmem:[%s0 + $0xc] sm:$0xf]
  %v25 = vld [vmem:[%s0 + $0x10] sm:$0xf]
  %v26 = vld [vmem:[%s0 + $0x14] sm:$0xf]
  %v27 = vld [vmem:[%s0 + $0x18] sm:$0xf]
  %v28 = vld [vmem:[%s0 + $0x1c] sm:$0xf]
  %v29 = vld [vmem:[%s0 + $0x20] sm:$0xf]
  %v30 = vld [vmem:[%s0 + $0x24] sm:$0xf]
  %v31 = vld [vmem:[%s0 + $0x28] sm:$0xf]
  %v32 = vld [vmem:[%s0 + $0x2c] sm:$0xf]
  %v33 = vld [vmem:[%s0 + $0x30] sm:$0xf]
  %v34 = vld [vmem:[%s0 + $0x34] sm:$0xf]
  %v35 = vld [vmem:[%s0 + $0x38] sm:$0xf]
  %v36 = vld [vmem:[%s0 + $0x3c] sm:$0xf]
  %v37 = vld [vmem:[%s0 + $0x40] sm:$0xf]
  %v38 = vld [vmem:[%s0 + $0x44] sm:$0xf]
  %v39 = vld [vmem:[%s0 + $0x48] sm:$0xf]
  %v40 = vld [vmem:[%s0 + $0x4c] sm:$0xf]
  %v41 = vld [vmem:[%s0 + $0x50] sm:$0xf]
  %v42 = vld [vmem:[%s0 + $0x54] sm:$0xf]
  %v43 = vld [vmem:[%s0 + $0x58] sm:$0xf]
  %v44 = vld [vmem:[%s0 + $0x5c] sm:$0xf]
  %v45 = vld [vmem:[%s0 + $0x60] sm:$0xf]
  %v46 = vld [vmem:[%s0 + $0x64] sm:$0xf]
  %v47 = vld [vmem:[%s0 + $0x68] sm:$0xf]
  %v48 = vld [vmem:[%s0 + $0x6c] sm:$0xf]
  %v49 = vld [vmem:[%s0 + $0x70] sm:$0xf]
  %v50 = vld [vmem:[%s0 + $0x74] sm:$0xf]
  %v51 = vld [vmem:[%s0 + $0x78] sm:$0xf]
  %v52 = vld [vmem:[%s0 + $0x7c] sm:$0xf]
  %v53 = vld [vmem:[%s0 + $0x80] sm:$0xf]
  %v54 = vld [vmem:[%s0 + $0x84] sm:$0xf]
  %v55 = vld [vmem:[%s0 + $0x88] sm:$0xf]
  %v56 = vld [vmem:[%s0 + $0x8c] sm:$0xf]
  %v57 = vld [vmem:[%s0 + $0x90] sm:$0xf]
  %v58 = vld [vmem:[%s0 + $0x94] sm:$0xf]
  %v59 = vld [vmem:[%s0 + $0x98] sm:$0xf]
  %v60 = vld [vmem:[%s0 + $0x9c] sm:$0xf]
  %v61 = vld [vmem:[%s0 + $0xa0] sm:$0xf]
  %v62 = vld [vmem:[%s0 + $0xa4] sm:$0xf]
  %v63 = vld [vmem:[%s0 + $0xa8] sm:$0xf]
  %v64 = vld [vmem:[%s0 + $0xac] sm:$0xf]
  %v65 = vld [vmem:[%s0 + $0xb0] sm:$0xf]
  %v66 = vld [vmem:[%s0 + $0xb4] sm:$0xf]
  %v67 = vld [vmem:[%s0 + $0xb8] sm:$0xf]
  %v68 = vld [vmem:[%s0 + $0xbc] sm:$0xf]
  %v69 = vld [vmem:[%s0 + $0xc0] sm:$0xf]
  %v70 = vld [vmem:[%s0 + $0xc4] sm:$0xf]
  %v71 = vld [vmem:[%s0 + $0xc8] sm:$0xf]
  %v72 = vld [vmem:[%s0 + $0xcc] sm:$0xf]
  %v73 = vld [vmem:[%s0 + $0xd0] sm:$0xf]
  %v74 = vld [vmem:[%s0 + $0xd4] sm:$0xf]
  %v75 = vld [vmem:[%s0 + $0xd8] sm:$0xf]
  %v76 = vld [vmem:[%s0 + $0xdc] sm:$0xf]
  %v77 = vld [vmem:[%s0 + $0xe0] sm:$0xf]
  %v78 = vld [vmem:[%s0 + $0xe4] sm:$0xf]
  %v79 = vld [vmem:[%s0 + $0xe8] sm:$0xf]
  %v80 = vld [vmem:[%s0 + $0xec] sm:$0xf]
  %v81 = vld [vmem:[%s0 + $0xf0] sm:$0xf]
  %v82 = vld [vmem:[%s0 + $0xf4] sm:$0xf]
  %v83 = vld [vmem:[%s0 + $0xf8] sm:$0xf]
  %v84 = vld [vmem:[%s0 + $0xfc] sm:$0xf]
  %v85 = vld [vmem:[%s1] sm:$0xf]
  %v86 = vld [vmem:[%s1 + $0x4] sm:$0xf]
  %v87 = vld [vmem:[%s1 + $0x8] sm:$0xf]
  %v88 = vld [vmem:[%s1 + $0xc] sm:$0xf]
  %v89 = vld [vmem:[%s1 + $0x10] sm:$0xf]
  %v90 = vld [vmem:[%s1 + $0x14] sm:$0xf]
  %v155 = vunpack.c.l.b16 %v21
  %v156 = vunpack.c.l.b16 %v22
  %v157 = vunpack.c.l.b16 %v23
  %v158 = vunpack.c.l.b16 %v24
  %v159 = vunpack.c.l.b16 %v25
  %v160 = vunpack.c.l.b16 %v26
  %v161 = vunpack.c.l.b16 %v27
  %v162 = vunpack.c.l.b16 %v28
  %v163 = vunpack.c.l.b16 %v29
  %v164 = vunpack.c.l.b16 %v30
  %v165 = vunpack.c.l.b16 %v31
  %v166 = vunpack.c.l.b16 %v32
  %v167 = vunpack.c.l.b16 %v33
  %v168 = vunpack.c.l.b16 %v34
  %v169 = vunpack.c.l.b16 %v35
  %v170 = vunpack.c.l.b16 %v36
  %v171 = vunpack.c.l.b16 %v37
  %v172 = vunpack.c.l.b16 %v38
  %v173 = vunpack.c.l.b16 %v39
  %v174 = vunpack.c.l.b16 %v40
  %v175 = vunpack.c.l.b16 %v41
  %v176 = vunpack.c.l.b16 %v42
  %v177 = vunpack.c.l.b16 %v43
  %v178 = vunpack.c.l.b16 %v44
  %v179 = vunpack.c.l.b16 %v45
  %v180 = vunpack.c.l.b16 %v46
  %v181 = vunpack.c.l.b16 %v47
  %v182 = vunpack.c.l.b16 %v48
  %v183 = vunpack.c.l.b16 %v49
  %v184 = vunpack.c.l.b16 %v50
  %v185 = vunpack.c.l.b16 %v51
  %v186 = vunpack.c.l.b16 %v52
  %v187 = vunpack.c.l.b16 %v53
  %v188 = vunpack.c.l.b16 %v54
  %v189 = vunpack.c.l.b16 %v55
  %v190 = vunpack.c.l.b16 %v56
  %v191 = vunpack.c.l.b16 %v57
  %v192 = vunpack.c.l.b16 %v58
  %v193 = vunpack.c.l.b16 %v59
  %v194 = vunpack.c.l.b16 %v60
  %v195 = vunpack.c.l.b16 %v61
  %v196 = vunpack.c.l.b16 %v62
  %v197 = vunpack.c.l.b16 %v63
  %v198 = vunpack.c.l.b16 %v64
  %v199 = vunpack.c.l.b16 %v65
  %v200 = vunpack.c.l.b16 %v66
  %v201 = vunpack.c.l.b16 %v67
  %v202 = vunpack.c.l.b16 %v68
  %v203 = vunpack.c.l.b16 %v69
  %v204 = vunpack.c.l.b16 %v70
  %v205 = vunpack.c.l.b16 %v71
  %v206 = vunpack.c.l.b16 %v72
  %v207 = vunpack.c.l.b16 %v73
  %v208 = vunpack.c.l.b16 %v74
  %v209 = vunpack.c.l.b16 %v75
  %v210 = vunpack.c.l.b16 %v76
  %v211 = vunpack.c.l.b16 %v77
  %v212 = vunpack.c.l.b16 %v78
  %v213 = vunpack.c.l.b16 %v79
  %v214 = vunpack.c.l.b16 %v80
  %v215 = vunpack.c.l.b16 %v81
  %v216 = vunpack.c.l.b16 %v82
  %v217 = vunpack.c.l.b16 %v83
  %v218 = vunpack.c.l.b16 %v84
  %v219 = vpack.c.b16 %v156, %v155
  %v220 = vpack.c.b16 %v158, %v157
  %v221 = vpack.c.b16 %v160, %v159
  %v222 = vpack.c.b16 %v162, %v161
  %v223 = vpack.c.b16 %v164, %v163
  %v224 = vpack.c.b16 %v166, %v165
  %v225 = vpack.c.b16 %v168, %v167
  %v226 = vpack.c.b16 %v170, %v169
  %v227 = vpack.c.b16 %v172, %v171
  %v228 = vpack.c.b16 %v174, %v173
  %v229 = vpack.c.b16 %v176, %v175
  %v230 = vpack.c.b16 %v178, %v177
  %v231 = vpack.c.b16 %v180, %v179
  %v232 = vpack.c.b16 %v182, %v181
  %v233 = vpack.c.b16 %v184, %v183
  %v234 = vpack.c.b16 %v186, %v185
  %v235 = vpack.c.b16 %v188, %v187
  %v236 = vpack.c.b16 %v190, %v189
  %v237 = vpack.c.b16 %v192, %v191
  %v238 = vpack.c.b16 %v194, %v193
  %v239 = vpack.c.b16 %v196, %v195
  %v240 = vpack.c.b16 %v198, %v197
  %v241 = vpack.c.b16 %v200, %v199
  %v242 = vpack.c.b16 %v202, %v201
  %v243 = vpack.c.b16 %v204, %v203
  %v244 = vpack.c.b16 %v206, %v205
  %v245 = vpack.c.b16 %v208, %v207
  %v246 = vpack.c.b16 %v210, %v209
  %v247 = vpack.c.b16 %v212, %v211
  %v248 = vpack.c.b16 %v214, %v213
  %v249 = vpack.c.b16 %v216, %v215
  %v250 = vpack.c.b16 %v218, %v217
  %v257 = vunpack.c.l.b16 %v85
  %v258 = vunpack.c.l.b16 %v86
  %v259 = vunpack.c.l.b16 %v87
  %v260 = vunpack.c.l.b16 %v88
  %v261 = vunpack.c.l.b16 %v89
  %v262 = vunpack.c.l.b16 %v90
  %v263 = vpack.c.b16 %v258, %v257
  %v264 = vpack.c.b16 %v260, %v259
  %v265 = vpack.c.b16 %v262, %v261
  %vm269 = vcmask 392192
  %v271 = vsel %vm269, %v219, 0
  %v274 = vsel %vm269, %v220, 0
  %v277 = vsel %vm269, %v221, 0
  %v280 = vsel %vm269, %v222, 0
  %v283 = vsel %vm269, %v223, 0
  %v286 = vsel %vm269, %v224, 0
  %v289 = vsel %vm269, %v225, 0
  %v292 = vsel %vm269, %v226, 0
  %v295 = vsel %vm269, %v227, 0
  %v298 = vsel %vm269, %v228, 0
  %v301 = vsel %vm269, %v229, 0
  %v304 = vsel %vm269, %v230, 0
  %v307 = vsel %vm269, %v231, 0
  %v310 = vsel %vm269, %v232, 0
  %v313 = vsel %vm269, %v233, 0
  %v316 = vsel %vm269, %v234, 0
  %v319 = vsel %vm269, %v235, 0
  %v322 = vsel %vm269, %v236, 0
  %v325 = vsel %vm269, %v237, 0
  %v328 = vsel %vm269, %v238, 0
  %v331 = vsel %vm269, %v239, 0
  %v334 = vsel %vm269, %v240, 0
  %v337 = vsel %vm269, %v241, 0
  %v340 = vsel %vm269, %v242, 0
  %v343 = vsel %vm269, %v243, 0
  %v346 = vsel %vm269, %v244, 0
  %v349 = vsel %vm269, %v245, 0
  %v352 = vsel %vm269, %v246, 0
  %v355 = vsel %vm269, %v247, 0
  %v358 = vsel %vm269, %v248, 0
  %v361 = vsel %vm269, %v249, 0
  %v364 = vsel %vm269, %v250, 0
  %366 = vmatprep.subr.bf16.mxu0 0
  %367 = vmatpush1.bf16.msra.mxu0 0
  %368 = vmatprep.subr.bf16.mxu0 0
  %369 = vmatpush1.bf16.msra.mxu0 0
  %370 = vmatprep.subr.bf16.mxu0 0
  %371 = vmatpush1.bf16.msra.mxu0 0
  %372 = vmatprep.subr.bf16.mxu0 0
  %373 = vmatpush1.bf16.msra.mxu0 0
  %374 = vmatprep.subr.bf16.mxu0 0
  %375 = vmatpush1.bf16.msra.mxu0 0
  %376 = vmatprep.subr.bf16.mxu0 0
  %377 = vmatpush1.bf16.msra.mxu0 %v265
  %378 = vmatprep.subr.bf16.mxu0 0
  %379 = vmatpush1.bf16.msra.mxu0 %v264
  %380 = vmatprep.subr.bf16.mxu0 0
  %381 = vmatpush1.bf16.msra.mxu0 %v263
  %382 = vmatprep.subr.bf16.mxu0 0
  %383 = vmatpush2.bf16.msra.mxu0 0
  %384 = vmatprep.subr.bf16.mxu0 0
  %385 = vmatpush2.bf16.msra.mxu0 0
  %386 = vmatprep.subr.bf16.mxu0 0
  %387 = vmatpush2.bf16.msra.mxu0 0
  %388 = vmatprep.subr.bf16.mxu0 0
  %389 = vmatpush2.bf16.msra.mxu0 0
  %390 = vmatprep.subr.bf16.mxu0 0
  %391 = vmatpush2.bf16.msra.mxu0 0
  %392 = vmatprep.subr.bf16.mxu0 0
  %393 = vmatpush2.bf16.msra.mxu0 0
  %394 = vmatprep.subr.bf16.mxu0 0
  %395 = vmatpush2.bf16.msra.mxu0 0
  %396 = vmatprep.subr.bf16.mxu0 0
  %397 = vmatpush2.bf16.msra.mxu0 0
  %398 = vmatprep.mubr.bf16.mxu0 0
  %399 = vmatmul.mubr.bf16.gmra.mxu0 %v271
  %v400 = vpop.f32.mrf.mxu0
  %v401 = vadd.f32 0.0, %v400
  %v402 = vpop.f32.mrf.mxu0
  %v403 = vpop.f32.mrf.mxu0
  %v404 = vadd.f32 0.0, %v403
  %v405 = vpop.f32.mrf.mxu0
  %406 = vmatprep.mubr.bf16.mxu0 0
  %407 = vmatmul.mubr.bf16.gmra.mxu0 %v274
  %v408 = vpop.f32.mrf.mxu0
  %v409 = vadd.f32 0.0, %v408
  %v410 = vpop.f32.mrf.mxu0
  %v411 = vpop.f32.mrf.mxu0
  %v412 = vadd.f32 0.0, %v411
  %v413 = vpop.f32.mrf.mxu0
  %414 = vmatprep.mubr.bf16.mxu0 0
  %415 = vmatmul.mubr.bf16.gmra.mxu0 %v277
  %v416 = vpop.f32.mrf.mxu0
  %v417 = vadd.f32 0.0, %v416
  %v418 = vpop.f32.mrf.mxu0
  %v419 = vpop.f32.mrf.mxu0
  %v420 = vadd.f32 0.0, %v419
  %v421 = vpop.f32.mrf.mxu0
  %422 = vmatprep.mubr.bf16.mxu0 0
  %423 = vmatmul.mubr.bf16.gmra.mxu0 %v280
  %v424 = vpop.f32.mrf.mxu0
  %v425 = vadd.f32 0.0, %v424
  %v426 = vpop.f32.mrf.mxu0
  %v427 = vpop.f32.mrf.mxu0
  %v428 = vadd.f32 0.0, %v427
  %v429 = vpop.f32.mrf.mxu0
  %430 = vmatprep.mubr.bf16.mxu0 0
  %431 = vmatmul.mubr.bf16.gmra.mxu0 %v283
  %v432 = vpop.f32.mrf.mxu0
  %v433 = vadd.f32 0.0, %v432
  %v434 = vpop.f32.mrf.mxu0
  %v435 = vpop.f32.mrf.mxu0
  %v436 = vadd.f32 0.0, %v435
  %v437 = vpop.f32.mrf.mxu0
  %438 = vmatprep.mubr.bf16.mxu0 0
  %439 = vmatmul.mubr.bf16.gmra.mxu0 %v286
  %v440 = vpop.f32.mrf.mxu0
  %v441 = vadd.f32 0.0, %v440
  %v442 = vpop.f32.mrf.mxu0
  %v443 = vpop.f32.mrf.mxu0
  %v444 = vadd.f32 0.0, %v443
  %v445 = vpop.f32.mrf.mxu0
  %446 = vmatprep.mubr.bf16.mxu0 0
  %447 = vmatmul.mubr.bf16.gmra.mxu0 %v289
  %v448 = vpop.f32.mrf.mxu0
  %v449 = vadd.f32 0.0, %v448
  %v450 = vpop.f32.mrf.mxu0
  %v451 = vpop.f32.mrf.mxu0
  %v452 = vadd.f32 0.0, %v451
  %v453 = vpop.f32.mrf.mxu0
  %454 = vmatprep.mubr.bf16.mxu0 0
  %455 = vmatmul.mubr.bf16.gmra.mxu0 %v292
  %v456 = vpop.f32.mrf.mxu0
  %v457 = vadd.f32 0.0, %v456
  %v458 = vpop.f32.mrf.mxu0
  %v459 = vpop.f32.mrf.mxu0
  %v460 = vadd.f32 0.0, %v459
  %v461 = vpop.f32.mrf.mxu0
  %462 = vmatprep.mubr.bf16.mxu0 0
  %463 = vmatmul.mubr.bf16.gmra.mxu0 %v295
  %v464 = vpop.f32.mrf.mxu0
  %v465 = vadd.f32 0.0, %v464
  %v466 = vpop.f32.mrf.mxu0
  %v467 = vpop.f32.mrf.mxu0
  %v468 = vadd.f32 0.0, %v467
  %v469 = vpop.f32.mrf.mxu0
  %470 = vmatprep.mubr.bf16.mxu0 0
  %471 = vmatmul.mubr.bf16.gmra.mxu0 %v298
  %v472 = vpop.f32.mrf.mxu0
  %v473 = vadd.f32 0.0, %v472
  %v474 = vpop.f32.mrf.mxu0
  %v475 = vpop.f32.mrf.mxu0
  %v476 = vadd.f32 0.0, %v475
  %v477 = vpop.f32.mrf.mxu0
  %478 = vmatprep.mubr.bf16.mxu0 0
  %479 = vmatmul.mubr.bf16.gmra.mxu0 %v301
  %v480 = vpop.f32.mrf.mxu0
  %v481 = vadd.f32 0.0, %v480
  %v482 = vpop.f32.mrf.mxu0
  %v483 = vpop.f32.mrf.mxu0
  %v484 = vadd.f32 0.0, %v483
  %v485 = vpop.f32.mrf.mxu0
  %486 = vmatprep.mubr.bf16.mxu0 0
  %487 = vmatmul.mubr.bf16.gmra.mxu0 %v304
  %v488 = vpop.f32.mrf.mxu0
  %v489 = vadd.f32 0.0, %v488
  %v490 = vpop.f32.mrf.mxu0
  %v491 = vpop.f32.mrf.mxu0
  %v492 = vadd.f32 0.0, %v491
  %v493 = vpop.f32.mrf.mxu0
  %494 = vmatprep.mubr.bf16.mxu0 0
  %495 = vmatmul.mubr.bf16.gmra.mxu0 %v307
  %v496 = vpop.f32.mrf.mxu0
  %v497 = vadd.f32 0.0, %v496
  %v498 = vpop.f32.mrf.mxu0
  %v499 = vpop.f32.mrf.mxu0
  %v500 = vadd.f32 0.0, %v499
  %v501 = vpop.f32.mrf.mxu0
  %502 = vmatprep.mubr.bf16.mxu0 0
  %503 = vmatmul.mubr.bf16.gmra.mxu0 %v310
  %v504 = vpop.f32.mrf.mxu0
  %v505 = vadd.f32 0.0, %v504
  %v506 = vpop.f32.mrf.mxu0
  %v507 = vpop.f32.mrf.mxu0
  %v508 = vadd.f32 0.0, %v507
  %v509 = vpop.f32.mrf.mxu0
  %510 = vmatprep.mubr.bf16.mxu0 0
  %511 = vmatmul.mubr.bf16.gmra.mxu0 %v313
  %v512 = vpop.f32.mrf.mxu0
  %v513 = vadd.f32 0.0, %v512
  %v514 = vpop.f32.mrf.mxu0
  %v515 = vpop.f32.mrf.mxu0
  %v516 = vadd.f32 0.0, %v515
  %v517 = vpop.f32.mrf.mxu0
  %518 = vmatprep.mubr.bf16.mxu0 0
  %519 = vmatmul.mubr.bf16.gmra.mxu0 %v316
  %v520 = vpop.f32.mrf.mxu0
  %v521 = vadd.f32 0.0, %v520
  %v522 = vpop.f32.mrf.mxu0
  %v523 = vpop.f32.mrf.mxu0
  %v524 = vadd.f32 0.0, %v523
  %v525 = vpop.f32.mrf.mxu0
  %526 = vmatprep.mubr.bf16.mxu0 0
  %527 = vmatmul.mubr.bf16.gmra.mxu0 %v319
  %v528 = vpop.f32.mrf.mxu0
  %v529 = vadd.f32 0.0, %v528
  %v530 = vpop.f32.mrf.mxu0
  %v531 = vpop.f32.mrf.mxu0
  %v532 = vadd.f32 0.0, %v531
  %v533 = vpop.f32.mrf.mxu0
  %534 = vmatprep.mubr.bf16.mxu0 0
  %535 = vmatmul.mubr.bf16.gmra.mxu0 %v322
  %v536 = vpop.f32.mrf.mxu0
  %v537 = vadd.f32 0.0, %v536
  %v538 = vpop.f32.mrf.mxu0
  %v539 = vpop.f32.mrf.mxu0
  %v540 = vadd.f32 0.0, %v539
  %v541 = vpop.f32.mrf.mxu0
  %542 = vmatprep.mubr.bf16.mxu0 0
  %543 = vmatmul.mubr.bf16.gmra.mxu0 %v325
  %v544 = vpop.f32.mrf.mxu0
  %v545 = vadd.f32 0.0, %v544
  %v546 = vpop.f32.mrf.mxu0
  %v547 = vpop.f32.mrf.mxu0
  %v548 = vadd.f32 0.0, %v547
  %v549 = vpop.f32.mrf.mxu0
  %550 = vmatprep.mubr.bf16.mxu0 0
  %551 = vmatmul.mubr.bf16.gmra.mxu0 %v328
  %v552 = vpop.f32.mrf.mxu0
  %v553 = vadd.f32 0.0, %v552
  %v554 = vpop.f32.mrf.mxu0
  %v555 = vpop.f32.mrf.mxu0
  %v556 = vadd.f32 0.0, %v555
  %v557 = vpop.f32.mrf.mxu0
  %558 = vmatprep.mubr.bf16.mxu0 0
  %559 = vmatmul.mubr.bf16.gmra.mxu0 %v331
  %v560 = vpop.f32.mrf.mxu0
  %v561 = vadd.f32 0.0, %v560
  %v562 = vpop.f32.mrf.mxu0
  %v563 = vpop.f32.mrf.mxu0
  %v564 = vadd.f32 0.0, %v563
  %v565 = vpop.f32.mrf.mxu0
  %566 = vmatprep.mubr.bf16.mxu0 0
  %567 = vmatmul.mubr.bf16.gmra.mxu0 %v334
  %v568 = vpop.f32.mrf.mxu0
  %v569 = vadd.f32 0.0, %v568
  %v570 = vpop.f32.mrf.mxu0
  %v571 = vpop.f32.mrf.mxu0
  %v572 = vadd.f32 0.0, %v571
  %v573 = vpop.f32.mrf.mxu0
  %574 = vmatprep.mubr.bf16.mxu0 0
  %575 = vmatmul.mubr.bf16.gmra.mxu0 %v337
  %v576 = vpop.f32.mrf.mxu0
  %v577 = vadd.f32 0.0, %v576
  %v578 = vpop.f32.mrf.mxu0
  %v579 = vpop.f32.mrf.mxu0
  %v580 = vadd.f32 0.0, %v579
  %v581 = vpop.f32.mrf.mxu0
  %582 = vmatprep.mubr.bf16.mxu0 0
  %583 = vmatmul.mubr.bf16.gmra.mxu0 %v340
  %v584 = vpop.f32.mrf.mxu0
  %v585 = vadd.f32 0.0, %v584
  %v586 = vpop.f32.mrf.mxu0
  %v587 = vpop.f32.mrf.mxu0
  %v588 = vadd.f32 0.0, %v587
  %v589 = vpop.f32.mrf.mxu0
  %590 = vmatprep.mubr.bf16.mxu0 0
  %591 = vmatmul.mubr.bf16.gmra.mxu0 %v343
  %v592 = vpop.f32.mrf.mxu0
  %v593 = vadd.f32 0.0, %v592
  %v594 = vpop.f32.mrf.mxu0
  %v595 = vpop.f32.mrf.mxu0
  %v596 = vadd.f32 0.0, %v595
  %v597 = vpop.f32.mrf.mxu0
  %598 = vmatprep.mubr.bf16.mxu0 0
  %599 = vmatmul.mubr.bf16.gmra.mxu0 %v346
  %v600 = vpop.f32.mrf.mxu0
  %v601 = vadd.f32 0.0, %v600
  %v602 = vpop.f32.mrf.mxu0
  %v603 = vpop.f32.mrf.mxu0
  %v604 = vadd.f32 0.0, %v603
  %v605 = vpop.f32.mrf.mxu0
  %606 = vmatprep.mubr.bf16.mxu0 0
  %607 = vmatmul.mubr.bf16.gmra.mxu0 %v349
  %v608 = vpop.f32.mrf.mxu0
  %v609 = vadd.f32 0.0, %v608
  %v610 = vpop.f32.mrf.mxu0
  %v611 = vpop.f32.mrf.mxu0
  %v612 = vadd.f32 0.0, %v611
  %v613 = vpop.f32.mrf.mxu0
  %614 = vmatprep.mubr.bf16.mxu0 0
  %615 = vmatmul.mubr.bf16.gmra.mxu0 %v352
  %v616 = vpop.f32.mrf.mxu0
  %v617 = vadd.f32 0.0, %v616
  %v618 = vpop.f32.mrf.mxu0
  %v619 = vpop.f32.mrf.mxu0
  %v620 = vadd.f32 0.0, %v619
  %v621 = vpop.f32.mrf.mxu0
  %622 = vmatprep.mubr.bf16.mxu0 0
  %623 = vmatmul.mubr.bf16.gmra.mxu0 %v355
  %v624 = vpop.f32.mrf.mxu0
  %v625 = vadd.f32 0.0, %v624
  %v626 = vpop.f32.mrf.mxu0
  %v627 = vpop.f32.mrf.mxu0
  %v628 = vadd.f32 0.0, %v627
  %v629 = vpop.f32.mrf.mxu0
  %630 = vmatprep.mubr.bf16.mxu0 0
  %631 = vmatmul.mubr.bf16.gmra.mxu0 %v358
  %v632 = vpop.f32.mrf.mxu0
  %v633 = vadd.f32 0.0, %v632
  %v634 = vpop.f32.mrf.mxu0
  %v635 = vpop.f32.mrf.mxu0
  %v636 = vadd.f32 0.0, %v635
  %v637 = vpop.f32.mrf.mxu0
  %638 = vmatprep.mubr.bf16.mxu0 0
  %639 = vmatmul.mubr.bf16.gmra.mxu0 %v361
  %v640 = vpop.f32.mrf.mxu0
  %v641 = vadd.f32 0.0, %v640
  %v642 = vpop.f32.mrf.mxu0
  %v643 = vpop.f32.mrf.mxu0
  %v644 = vadd.f32 0.0, %v643
  %v645 = vpop.f32.mrf.mxu0
  %646 = vmatprep.mubr.bf16.mxu0 0
  %647 = vmatmul.mubr.bf16.gmra.mxu0 %v364
  %v648 = vpop.f32.mrf.mxu0
  %v649 = vadd.f32 0.0, %v648
  %v650 = vpop.f32.mrf.mxu0
  %v651 = vpop.f32.mrf.mxu0
  %v652 = vadd.f32 0.0, %v651
  %v653 = vpop.f32.mrf.mxu0
  %654 = vdwg.mxu0
  %v655 = vadd.f32 %v401, %v404
  %v656 = vadd.f32 %v655, %v409
  %v657 = vadd.f32 %v656, %v412
  %v658 = vadd.f32 %v657, %v417
  %v659 = vadd.f32 %v658, %v420
  %v660 = vadd.f32 %v659, %v425
  %v661 = vadd.f32 %v660, %v428
  %v662 = vadd.f32 %v661, %v433
  %v663 = vadd.f32 %v662, %v436
  %v664 = vadd.f32 %v663, %v441
  %v665 = vadd.f32 %v664, %v444
  %v666 = vadd.f32 %v665, %v449
  %v667 = vadd.f32 %v666, %v452
  %v668 = vadd.f32 %v667, %v457
  %v669 = vadd.f32 %v668, %v460
  %v670 = vadd.f32 %v669, %v465
  %v671 = vadd.f32 %v670, %v468
  %v672 = vadd.f32 %v671, %v473
  %v673 = vadd.f32 %v672, %v476
  %v674 = vadd.f32 %v673, %v481
  %v675 = vadd.f32 %v674, %v484
  %v676 = vadd.f32 %v675, %v489
  %v677 = vadd.f32 %v676, %v492
  %v678 = vadd.f32 %v677, %v497
  %v679 = vadd.f32 %v678, %v500
  %v680 = vadd.f32 %v679, %v505
  %v681 = vadd.f32 %v680, %v508
  %v682 = vadd.f32 %v681, %v513
  %v683 = vadd.f32 %v682, %v516
  %v684 = vadd.f32 %v683, %v521
  %v685 = vadd.f32 %v684, %v524
  %v686 = vadd.f32 %v685, %v529
  %v687 = vadd.f32 %v686, %v532
  %v688 = vadd.f32 %v687, %v537
  %v689 = vadd.f32 %v688, %v540
  %v690 = vadd.f32 %v689, %v545
  %v691 = vadd.f32 %v690, %v548
  %v692 = vadd.f32 %v691, %v553
  %v693 = vadd.f32 %v692, %v556
  %v694 = vadd.f32 %v693, %v561
  %v695 = vadd.f32 %v694, %v564
  %v696 = vadd.f32 %v695, %v569
  %v697 = vadd.f32 %v696, %v572
  %v698 = vadd.f32 %v697, %v577
  %v699 = vadd.f32 %v698, %v580
  %v700 = vadd.f32 %v699, %v585
  %v701 = vadd.f32 %v700, %v588
  %v702 = vadd.f32 %v701, %v593
  %v703 = vadd.f32 %v702, %v596
  %v704 = vadd.f32 %v703, %v601
  %v705 = vadd.f32 %v704, %v604
  %v706 = vadd.f32 %v705, %v609
  %v707 = vadd.f32 %v706, %v612
  %v708 = vadd.f32 %v707, %v617
  %v709 = vadd.f32 %v708, %v620
  %v710 = vadd.f32 %v709, %v625
  %v711 = vadd.f32 %v710, %v628
  %v712 = vadd.f32 %v711, %v633
  %v713 = vadd.f32 %v712, %v636
  %v714 = vadd.f32 %v713, %v641
  %v715 = vadd.f32 %v714, %v644
  %v716 = vadd.f32 %v715, %v649
  %v717 = vadd.f32 %v716, %v652
  %v718 = vrot.slane %v717, 4
  %v719 = vadd.f32 %v717, %v718
  %v720 = vrot.slane %v719, 2
  %v721 = vadd.f32 %v719, %v720
  %v722 = vrot.slane %v721, 1
  %v723 = vadd.f32 %v721, %v722
  %v724 = vmul.f32 %v401, %v401
  %v725 = vmul.f32 %v404, %v404
  %v726 = vmul.f32 %v409, %v409
  %v727 = vmul.f32 %v412, %v412
  %v728 = vmul.f32 %v417, %v417
  %v729 = vmul.f32 %v420, %v420
  %v730 = vmul.f32 %v425, %v425
  %v731 = vmul.f32 %v428, %v428
  %v732 = vmul.f32 %v433, %v433
  %v733 = vmul.f32 %v436, %v436
  %v734 = vmul.f32 %v441, %v441
  %v735 = vmul.f32 %v444, %v444
  %v736 = vmul.f32 %v449, %v449
  %v737 = vmul.f32 %v452, %v452
  %v738 = vmul.f32 %v457, %v457
  %v739 = vmul.f32 %v460, %v460
  %v740 = vmul.f32 %v465, %v465
  %v741 = vmul.f32 %v468, %v468
  %v742 = vmul.f32 %v473, %v473
  %v743 = vmul.f32 %v476, %v476
  %v744 = vmul.f32 %v481, %v481
  %v745 = vmul.f32 %v484, %v484
  %v746 = vmul.f32 %v489, %v489
  %v747 = vmul.f32 %v492, %v492
  %v748 = vmul.f32 %v497, %v497
  %v749 = vmul.f32 %v500, %v500
  %v750 = vmul.f32 %v505, %v505
  %v751 = vmul.f32 %v508, %v508
  %v752 = vmul.f32 %v513, %v513
  %v753 = vmul.f32 %v516, %v516
  %v754 = vmul.f32 %v521, %v521
  %v755 = vmul.f32 %v524, %v524
  %v756 = vmul.f32 %v529, %v529
  %v757 = vmul.f32 %v532, %v532
  %v758 = vmul.f32 %v537, %v537
  %v759 = vmul.f32 %v540, %v540
  %v760 = vmul.f32 %v545, %v545
  %v761 = vmul.f32 %v548, %v548
  %v762 = vmul.f32 %v553, %v553
  %v763 = vmul.f32 %v556, %v556
  %v764 = vmul.f32 %v561, %v561
  %v765 = vmul.f32 %v564, %v564
  %v766 = vmul.f32 %v569, %v569
  %v767 = vmul.f32 %v572, %v572
  %v768 = vmul.f32 %v577, %v577
  %v769 = vmul.f32 %v580, %v580
  %v770 = vmul.f32 %v585, %v585
  %v771 = vmul.f32 %v588, %v588
  %v772 = vmul.f32 %v593, %v593
  %v773 = vmul.f32 %v596, %v596
  %v774 = vmul.f32 %v601, %v601
  %v775 = vmul.f32 %v604, %v604
  %v776 = vmul.f32 %v609, %v609
  %v777 = vmul.f32 %v612, %v612
  %v778 = vmul.f32 %v617, %v617
  %v779 = vmul.f32 %v620, %v620
  %v780 = vmul.f32 %v625, %v625
  %v781 = vmul.f32 %v628, %v628
  %v782 = vmul.f32 %v633, %v633
  %v783 = vmul.f32 %v636, %v636
  %v784 = vmul.f32 %v641, %v641
  %v785 = vmul.f32 %v644, %v644
  %v786 = vmul.f32 %v649, %v649
  %v787 = vmul.f32 %v652, %v652
  %v788 = vadd.f32 %v724, %v725
  %v789 = vadd.f32 %v788, %v726
  %v790 = vadd.f32 %v789, %v727
  %v791 = vadd.f32 %v790, %v728
  %v792 = vadd.f32 %v791, %v729
  %v793 = vadd.f32 %v792, %v730
  %v794 = vadd.f32 %v793, %v731
  %v795 = vadd.f32 %v794, %v732
  %v796 = vadd.f32 %v795, %v733
  %v797 = vadd.f32 %v796, %v734
  %v798 = vadd.f32 %v797, %v735
  %v799 = vadd.f32 %v798, %v736
  %v800 = vadd.f32 %v799, %v737
  %v801 = vadd.f32 %v800, %v738
  %v802 = vadd.f32 %v801, %v739
  %v803 = vadd.f32 %v802, %v740
  %v804 = vadd.f32 %v803, %v741
  %v805 = vadd.f32 %v804, %v742
  %v806 = vadd.f32 %v805, %v743
  %v807 = vadd.f32 %v806, %v744
  %v808 = vadd.f32 %v807, %v745
  %v809 = vadd.f32 %v808, %v746
  %v810 = vadd.f32 %v809, %v747
  %v811 = vadd.f32 %v810, %v748
  %v812 = vadd.f32 %v811, %v749
  %v813 = vadd.f32 %v812, %v750
  %v814 = vadd.f32 %v813, %v751
  %v815 = vadd.f32 %v814, %v752
  %v816 = vadd.f32 %v815, %v753
  %v817 = vadd.f32 %v816, %v754
  %v818 = vadd.f32 %v817, %v755
  %v819 = vadd.f32 %v818, %v756
  %v820 = vadd.f32 %v819, %v757
  %v821 = vadd.f32 %v820, %v758
  %v822 = vadd.f32 %v821, %v759
  %v823 = vadd.f32 %v822, %v760
  %v824 = vadd.f32 %v823, %v761
  %v825 = vadd.f32 %v824, %v762
  %v826 = vadd.f32 %v825, %v763
  %v827 = vadd.f32 %v826, %v764
  %v828 = vadd.f32 %v827, %v765
  %v829 = vadd.f32 %v828, %v766
  %v830 = vadd.f32 %v829, %v767
  %v831 = vadd.f32 %v830, %v768
  %v832 = vadd.f32 %v831, %v769
  %v833 = vadd.f32 %v832, %v770
  %v834 = vadd.f32 %v833, %v771
  %v835 = vadd.f32 %v834, %v772
  %v836 = vadd.f32 %v835, %v773
  %v837 = vadd.f32 %v836, %v774
  %v838 = vadd.f32 %v837, %v775
  %v839 = vadd.f32 %v838, %v776
  %v840 = vadd.f32 %v839, %v777
  %v841 = vadd.f32 %v840, %v778
  %v842 = vadd.f32 %v841, %v779
  %v843 = vadd.f32 %v842, %v780
  %v844 = vadd.f32 %v843, %v781
  %v845 = vadd.f32 %v844, %v782
  %v846 = vadd.f32 %v845, %v783
  %v847 = vadd.f32 %v846, %v784
  %v848 = vadd.f32 %v847, %v785
  %v849 = vadd.f32 %v848, %v786
  %v850 = vadd.f32 %v849, %v787
  %v851 = vrot.slane %v850, 4
  %v852 = vadd.f32 %v850, %v851
  %v853 = vrot.slane %v852, 2
  %v854 = vadd.f32 %v852, %v853
  %v855 = vrot.slane %v854, 1
  %v856 = vadd.f32 %v854, %v855
  %v857 = vmul.f32 %v723, 0.001953125
  %v858 = vmul.f32 %v856, 0.001953125
  %v859 = vmul.f32 %v857, %v857
  %v860 = vsub.f32 %v858, %v859
  %v861 = vmax.f32 %v860, 0.0
  %v862 = vadd.f32 %v861, 1e-05
  %v863 = vrsqrt.pop %v862
  %v864 = vld [vmem:[%s3] sm:$0x1]
  %v865 = vmul.f32 %v864, %v863
  %v866 = vld [vmem:[%s4] sm:$0x1]
  %v867 = vld [vmem:[%s2] sm:$0x1]
  %v868 = vadd.f32 %v857, %v867
  %v869 = vmul.f32 %v868, %v865
  %v870 = vsub.f32 %v866, %v869
  %v872 = vlaneseq
  %v873 = vshrl.u32 %v872, 7
  %v874 = vsub.s32 0, %v873
  %v875 = vrot.slane %v867, %v874
  %v877 = vadd.f32 %v401, %v875
  %v878 = vadd.f32 %v404, %v875
  %v879 = vadd.f32 %v409, %v875
  %v880 = vadd.f32 %v412, %v875
  %v881 = vadd.f32 %v417, %v875
  %v882 = vadd.f32 %v420, %v875
  %v883 = vadd.f32 %v425, %v875
  %v884 = vadd.f32 %v428, %v875
  %v885 = vadd.f32 %v433, %v875
  %v886 = vadd.f32 %v436, %v875
  %v887 = vadd.f32 %v441, %v875
  %v888 = vadd.f32 %v444, %v875
  %v889 = vadd.f32 %v449, %v875
  %v890 = vadd.f32 %v452, %v875
  %v891 = vadd.f32 %v457, %v875
  %v892 = vadd.f32 %v460, %v875
  %v893 = vadd.f32 %v465, %v875
  %v894 = vadd.f32 %v468, %v875
  %v895 = vadd.f32 %v473, %v875
  %v896 = vadd.f32 %v476, %v875
  %v897 = vadd.f32 %v481, %v875
  %v898 = vadd.f32 %v484, %v875
  %v899 = vadd.f32 %v489, %v875
  %v900 = vadd.f32 %v492, %v875
  %v901 = vadd.f32 %v497, %v875
  %v902 = vadd.f32 %v500, %v875
  %v903 = vadd.f32 %v505, %v875
  %v904 = vadd.f32 %v508, %v875
  %v905 = vadd.f32 %v513, %v875
  %v906 = vadd.f32 %v516, %v875
  %v907 = vadd.f32 %v521, %v875
  %v908 = vadd.f32 %v524, %v875
  %v909 = vadd.f32 %v529, %v875
  %v910 = vadd.f32 %v532, %v875
  %v911 = vadd.f32 %v537, %v875
  %v912 = vadd.f32 %v540, %v875
  %v913 = vadd.f32 %v545, %v875
  %v914 = vadd.f32 %v548, %v875
  %v915 = vadd.f32 %v553, %v875
  %v916 = vadd.f32 %v556, %v875
  %v917 = vadd.f32 %v561, %v875
  %v918 = vadd.f32 %v564, %v875
  %v919 = vadd.f32 %v569, %v875
  %v920 = vadd.f32 %v572, %v875
  %v921 = vadd.f32 %v577, %v875
  %v922 = vadd.f32 %v580, %v875
  %v923 = vadd.f32 %v585, %v875
  %v924 = vadd.f32 %v588, %v875
  %v925 = vadd.f32 %v593, %v875
  %v926 = vadd.f32 %v596, %v875
  %v927 = vadd.f32 %v601, %v875
  %v928 = vadd.f32 %v604, %v875
  %v929 = vadd.f32 %v609, %v875
  %v930 = vadd.f32 %v612, %v875
  %v931 = vadd.f32 %v617, %v875
  %v932 = vadd.f32 %v620, %v875
  %v933 = vadd.f32 %v625, %v875
  %v934 = vadd.f32 %v628, %v875
  %v935 = vadd.f32 %v633, %v875
  %v936 = vadd.f32 %v636, %v875
  %v937 = vadd.f32 %v641, %v875
  %v938 = vadd.f32 %v644, %v875
  %v939 = vadd.f32 %v649, %v875
  %v940 = vadd.f32 %v652, %v875
  %v942 = vlaneseq
  %v943 = vshrl.u32 %v942, 7
  %v944 = vsub.s32 0, %v943
  %v945 = vrot.slane %v865, %v944
  %v947 = vmul.f32 %v877, %v945
  %v948 = vmul.f32 %v878, %v945
  %v949 = vmul.f32 %v879, %v945
  %v950 = vmul.f32 %v880, %v945
  %v951 = vmul.f32 %v881, %v945
  %v952 = vmul.f32 %v882, %v945
  %v953 = vmul.f32 %v883, %v945
  %v954 = vmul.f32 %v884, %v945
  %v955 = vmul.f32 %v885, %v945
  %v956 = vmul.f32 %v886, %v945
  %v957 = vmul.f32 %v887, %v945
  %v958 = vmul.f32 %v888, %v945
  %v959 = vmul.f32 %v889, %v945
  %v960 = vmul.f32 %v890, %v945
  %v961 = vmul.f32 %v891, %v945
  %v962 = vmul.f32 %v892, %v945
  %v963 = vmul.f32 %v893, %v945
  %v964 = vmul.f32 %v894, %v945
  %v965 = vmul.f32 %v895, %v945
  %v966 = vmul.f32 %v896, %v945
  %v967 = vmul.f32 %v897, %v945
  %v968 = vmul.f32 %v898, %v945
  %v969 = vmul.f32 %v899, %v945
  %v970 = vmul.f32 %v900, %v945
  %v971 = vmul.f32 %v901, %v945
  %v972 = vmul.f32 %v902, %v945
  %v973 = vmul.f32 %v903, %v945
  %v974 = vmul.f32 %v904, %v945
  %v975 = vmul.f32 %v905, %v945
  %v976 = vmul.f32 %v906, %v945
  %v977 = vmul.f32 %v907, %v945
  %v978 = vmul.f32 %v908, %v945
  %v979 = vmul.f32 %v909, %v945
  %v980 = vmul.f32 %v910, %v945
  %v981 = vmul.f32 %v911, %v945
  %v982 = vmul.f32 %v912, %v945
  %v983 = vmul.f32 %v913, %v945
  %v984 = vmul.f32 %v914, %v945
  %v985 = vmul.f32 %v915, %v945
  %v986 = vmul.f32 %v916, %v945
  %v987 = vmul.f32 %v917, %v945
  %v988 = vmul.f32 %v918, %v945
  %v989 = vmul.f32 %v919, %v945
  %v990 = vmul.f32 %v920, %v945
  %v991 = vmul.f32 %v921, %v945
  %v992 = vmul.f32 %v922, %v945
  %v993 = vmul.f32 %v923, %v945
  %v994 = vmul.f32 %v924, %v945
  %v995 = vmul.f32 %v925, %v945
  %v996 = vmul.f32 %v926, %v945
  %v997 = vmul.f32 %v927, %v945
  %v998 = vmul.f32 %v928, %v945
  %v999 = vmul.f32 %v929, %v945
  %v1000 = vmul.f32 %v930, %v945
  %v1001 = vmul.f32 %v931, %v945
  %v1002 = vmul.f32 %v932, %v945
  %v1003 = vmul.f32 %v933, %v945
  %v1004 = vmul.f32 %v934, %v945
  %v1005 = vmul.f32 %v935, %v945
  %v1006 = vmul.f32 %v936, %v945
  %v1007 = vmul.f32 %v937, %v945
  %v1008 = vmul.f32 %v938, %v945
  %v1009 = vmul.f32 %v939, %v945
  %v1010 = vmul.f32 %v940, %v945
  %v1012 = vlaneseq
  %v1013 = vshrl.u32 %v1012, 7
  %v1014 = vsub.s32 0, %v1013
  %v1015 = vrot.slane %v870, %v1014
  %v1017 = vadd.f32 %v947, %v1015
  %v1018 = vadd.f32 %v948, %v1015
  %v1019 = vadd.f32 %v949, %v1015
  %v1020 = vadd.f32 %v950, %v1015
  %v1021 = vadd.f32 %v951, %v1015
  %v1022 = vadd.f32 %v952, %v1015
  %v1023 = vadd.f32 %v953, %v1015
  %v1024 = vadd.f32 %v954, %v1015
  %v1025 = vadd.f32 %v955, %v1015
  %v1026 = vadd.f32 %v956, %v1015
  %v1027 = vadd.f32 %v957, %v1015
  %v1028 = vadd.f32 %v958, %v1015
  %v1029 = vadd.f32 %v959, %v1015
  %v1030 = vadd.f32 %v960, %v1015
  %v1031 = vadd.f32 %v961, %v1015
  %v1032 = vadd.f32 %v962, %v1015
  %v1033 = vadd.f32 %v963, %v1015
  %v1034 = vadd.f32 %v964, %v1015
  %v1035 = vadd.f32 %v965, %v1015
  %v1036 = vadd.f32 %v966, %v1015
  %v1037 = vadd.f32 %v967, %v1015
  %v1038 = vadd.f32 %v968, %v1015
  %v1039 = vadd.f32 %v969, %v1015
  %v1040 = vadd.f32 %v970, %v1015
  %v1041 = vadd.f32 %v971, %v1015
  %v1042 = vadd.f32 %v972, %v1015
  %v1043 = vadd.f32 %v973, %v1015
  %v1044 = vadd.f32 %v974, %v1015
  %v1045 = vadd.f32 %v975, %v1015
  %v1046 = vadd.f32 %v976, %v1015
  %v1047 = vadd.f32 %v977, %v1015
  %v1048 = vadd.f32 %v978, %v1015
  %v1049 = vadd.f32 %v979, %v1015
  %v1050 = vadd.f32 %v980, %v1015
  %v1051 = vadd.f32 %v981, %v1015
  %v1052 = vadd.f32 %v982, %v1015
  %v1053 = vadd.f32 %v983, %v1015
  %v1054 = vadd.f32 %v984, %v1015
  %v1055 = vadd.f32 %v985, %v1015
  %v1056 = vadd.f32 %v986, %v1015
  %v1057 = vadd.f32 %v987, %v1015
  %v1058 = vadd.f32 %v988, %v1015
  %v1059 = vadd.f32 %v989, %v1015
  %v1060 = vadd.f32 %v990, %v1015
  %v1061 = vadd.f32 %v991, %v1015
  %v1062 = vadd.f32 %v992, %v1015
  %v1063 = vadd.f32 %v993, %v1015
  %v1064 = vadd.f32 %v994, %v1015
  %v1065 = vadd.f32 %v995, %v1015
  %v1066 = vadd.f32 %v996, %v1015
  %v1067 = vadd.f32 %v997, %v1015
  %v1068 = vadd.f32 %v998, %v1015
  %v1069 = vadd.f32 %v999, %v1015
  %v1070 = vadd.f32 %v1000, %v1015
  %v1071 = vadd.f32 %v1001, %v1015
  %v1072 = vadd.f32 %v1002, %v1015
  %v1073 = vadd.f32 %v1003, %v1015
  %v1074 = vadd.f32 %v1004, %v1015
  %v1075 = vadd.f32 %v1005, %v1015
  %v1076 = vadd.f32 %v1006, %v1015
  %v1077 = vadd.f32 %v1007, %v1015
  %v1078 = vadd.f32 %v1008, %v1015
  %v1079 = vadd.f32 %v1009, %v1015
  %v1080 = vadd.f32 %v1010, %v1015
  %v1081 = vmax.f32 %v1017, 0.0
  %v1082 = vmax.f32 %v1018, 0.0
  %v1083 = vmax.f32 %v1019, 0.0
  %v1084 = vmax.f32 %v1020, 0.0
  %v1085 = vmax.f32 %v1021, 0.0
  %v1086 = vmax.f32 %v1022, 0.0
  %v1087 = vmax.f32 %v1023, 0.0
  %v1088 = vmax.f32 %v1024, 0.0
  %v1089 = vmax.f32 %v1025, 0.0
  %v1090 = vmax.f32 %v1026, 0.0
  %v1091 = vmax.f32 %v1027, 0.0
  %v1092 = vmax.f32 %v1028, 0.0
  %v1093 = vmax.f32 %v1029, 0.0
  %v1094 = vmax.f32 %v1030, 0.0
  %v1095 = vmax.f32 %v1031, 0.0
  %v1096 = vmax.f32 %v1032, 0.0
  %v1097 = vmax.f32 %v1033, 0.0
  %v1098 = vmax.f32 %v1034, 0.0
  %v1099 = vmax.f32 %v1035, 0.0
  %v1100 = vmax.f32 %v1036, 0.0
  %v1101 = vmax.f32 %v1037, 0.0
  %v1102 = vmax.f32 %v1038, 0.0
  %v1103 = vmax.f32 %v1039, 0.0
  %v1104 = vmax.f32 %v1040, 0.0
  %v1105 = vmax.f32 %v1041, 0.0
  %v1106 = vmax.f32 %v1042, 0.0
  %v1107 = vmax.f32 %v1043, 0.0
  %v1108 = vmax.f32 %v1044, 0.0
  %v1109 = vmax.f32 %v1045, 0.0
  %v1110 = vmax.f32 %v1046, 0.0
  %v1111 = vmax.f32 %v1047, 0.0
  %v1112 = vmax.f32 %v1048, 0.0
  %v1113 = vmax.f32 %v1049, 0.0
  %v1114 = vmax.f32 %v1050, 0.0
  %v1115 = vmax.f32 %v1051, 0.0
  %v1116 = vmax.f32 %v1052, 0.0
  %v1117 = vmax.f32 %v1053, 0.0
  %v1118 = vmax.f32 %v1054, 0.0
  %v1119 = vmax.f32 %v1055, 0.0
  %v1120 = vmax.f32 %v1056, 0.0
  %v1121 = vmax.f32 %v1057, 0.0
  %v1122 = vmax.f32 %v1058, 0.0
  %v1123 = vmax.f32 %v1059, 0.0
  %v1124 = vmax.f32 %v1060, 0.0
  %v1125 = vmax.f32 %v1061, 0.0
  %v1126 = vmax.f32 %v1062, 0.0
  %v1127 = vmax.f32 %v1063, 0.0
  %v1128 = vmax.f32 %v1064, 0.0
  %v1129 = vmax.f32 %v1065, 0.0
  %v1130 = vmax.f32 %v1066, 0.0
  %v1131 = vmax.f32 %v1067, 0.0
  %v1132 = vmax.f32 %v1068, 0.0
  %v1133 = vmax.f32 %v1069, 0.0
  %v1134 = vmax.f32 %v1070, 0.0
  %v1135 = vmax.f32 %v1071, 0.0
  %v1136 = vmax.f32 %v1072, 0.0
  %v1137 = vmax.f32 %v1073, 0.0
  %v1138 = vmax.f32 %v1074, 0.0
  %v1139 = vmax.f32 %v1075, 0.0
  %v1140 = vmax.f32 %v1076, 0.0
  %v1141 = vmax.f32 %v1077, 0.0
  %v1142 = vmax.f32 %v1078, 0.0
  %v1143 = vmax.f32 %v1079, 0.0
  %v1144 = vmax.f32 %v1080, 0.0
  %1145 = vst [vmem:[%s5] sm:$0xff] %v1081
  %1146 = vst [vmem:[%s5 + $0x8] sm:$0xff] %v1082
  %1147 = vst [vmem:[%s5 + $0x10] sm:$0xff] %v1083
  %1148 = vst [vmem:[%s5 + $0x18] sm:$0xff] %v1084
  %1149 = vst [vmem:[%s5 + $0x20] sm:$0xff] %v1085
  %1150 = vst [vmem:[%s5 + $0x28] sm:$0xff] %v1086
  %1151 = vst [vmem:[%s5 + $0x30] sm:$0xff] %v1087
  %1152 = vst [vmem:[%s5 + $0x38] sm:$0xff] %v1088
  %1153 = vst [vmem:[%s5 + $0x40] sm:$0xff] %v1089
  %1154 = vst [vmem:[%s5 + $0x48] sm:$0xff] %v1090
  %1155 = vst [vmem:[%s5 + $0x50] sm:$0xff] %v1091
  %1156 = vst [vmem:[%s5 + $0x58] sm:$0xff] %v1092
  %1157 = vst [vmem:[%s5 + $0x60] sm:$0xff] %v1093
  %1158 = vst [vmem:[%s5 + $0x68] sm:$0xff] %v1094
  %1159 = vst [vmem:[%s5 + $0x70] sm:$0xff] %v1095
  %1160 = vst [vmem:[%s5 + $0x78] sm:$0xff] %v1096
  %1161 = vst [vmem:[%s5 + $0x80] sm:$0xff] %v1097
  %1162 = vst [vmem:[%s5 + $0x88] sm:$0xff] %v1098
  %1163 = vst [vmem:[%s5 + $0x90] sm:$0xff] %v1099
  %1164 = vst [vmem:[%s5 + $0x98] sm:$0xff] %v1100
  %1165 = vst [vmem:[%s5 + $0xa0] sm:$0xff] %v1101
  %1166 = vst [vmem:[%s5 + $0xa8] sm:$0xff] %v1102
  %1167 = vst [vmem:[%s5 + $0xb0] sm:$0xff] %v1103
  %1168 = vst [vmem:[%s5 + $0xb8] sm:$0xff] %v1104
  %1169 = vst [vmem:[%s5 + $0xc0] sm:$0xff] %v1105
  %1170 = vst [vmem:[%s5 + $0xc8] sm:$0xff] %v1106
  %1171 = vst [vmem:[%s5 + $0xd0] sm:$0xff] %v1107
  %1172 = vst [vmem:[%s5 + $0xd8] sm:$0xff] %v1108
  %1173 = vst [vmem:[%s5 + $0xe0] sm:$0xff] %v1109
  %1174 = vst [vmem:[%s5 + $0xe8] sm:$0xff] %v1110
  %1175 = vst [vmem:[%s5 + $0xf0] sm:$0xff] %v1111
  %1176 = vst [vmem:[%s5 + $0xf8] sm:$0xff] %v1112
  %1177 = vst [vmem:[%s5 + $0x100] sm:$0xff] %v1113
  %1178 = vst [vmem:[%s5 + $0x108] sm:$0xff] %v1114
  %1179 = vst [vmem:[%s5 + $0x110] sm:$0xff] %v1115
  %1180 = vst [vmem:[%s5 + $0x118] sm:$0xff] %v1116
  %1181 = vst [vmem:[%s5 + $0x120] sm:$0xff] %v1117
  %1182 = vst [vmem:[%s5 + $0x128] sm:$0xff] %v1118
  %1183 = vst [vmem:[%s5 + $0x130] sm:$0xff] %v1119
  %1184 = vst [vmem:[%s5 + $0x138] sm:$0xff] %v1120
  %1185 = vst [vmem:[%s5 + $0x140] sm:$0xff] %v1121
  %1186 = vst [vmem:[%s5 + $0x148] sm:$0xff] %v1122
  %1187 = vst [vmem:[%s5 + $0x150] sm:$0xff] %v1123
  %1188 = vst [vmem:[%s5 + $0x158] sm:$0xff] %v1124
  %1189 = vst [vmem:[%s5 + $0x160] sm:$0xff] %v1125
  %1190 = vst [vmem:[%s5 + $0x168] sm:$0xff] %v1126
  %1191 = vst [vmem:[%s5 + $0x170] sm:$0xff] %v1127
  %1192 = vst [vmem:[%s5 + $0x178] sm:$0xff] %v1128
  %1193 = vst [vmem:[%s5 + $0x180] sm:$0xff] %v1129
  %1194 = vst [vmem:[%s5 + $0x188] sm:$0xff] %v1130
  %1195 = vst [vmem:[%s5 + $0x190] sm:$0xff] %v1131
  %1196 = vst [vmem:[%s5 + $0x198] sm:$0xff] %v1132
  %1197 = vst [vmem:[%s5 + $0x1a0] sm:$0xff] %v1133
  %1198 = vst [vmem:[%s5 + $0x1a8] sm:$0xff] %v1134
  %1199 = vst [vmem:[%s5 + $0x1b0] sm:$0xff] %v1135
  %1200 = vst [vmem:[%s5 + $0x1b8] sm:$0xff] %v1136
  %1201 = vst [vmem:[%s5 + $0x1c0] sm:$0xff] %v1137
  %1202 = vst [vmem:[%s5 + $0x1c8] sm:$0xff] %v1138
  %1203 = vst [vmem:[%s5 + $0x1d0] sm:$0xff] %v1139
  %1204 = vst [vmem:[%s5 + $0x1d8] sm:$0xff] %v1140
  %1205 = vst [vmem:[%s5 + $0x1e0] sm:$0xff] %v1141
  %1206 = vst [vmem:[%s5 + $0x1e8] sm:$0xff] %v1142
  %1207 = vst [vmem:[%s5 + $0x1f0] sm:$0xff] %v1143
  %1208 = vst [vmem:[%s5 + $0x1f8] sm:$0xff] %v1144
  // Predicated region
  $region22: #{basic_block_forward.1} parent=0 // pred_check
    _
  $region23: #{basic_block_forward.1} parent=0 // pred_check_branch
    %1210 = sbr.rel (0) target = $region25
  $region24: #{basic_block_forward.1} parent=0 // pred_region
    _
  $region25: #{basic_block_forward.1} parent=0 // pred_fallthru
    _
  // Predicated region
  $region26: #{basic_block_forward.1} parent=0 // pred_check
    _
  $region27: #{basic_block_forward.1} parent=0 // pred_check_branch
    %1212 = sbr.rel (0) target = $region29
  $region28: #{basic_block_forward.1} parent=0 // pred_region
    _
  $region29: #{basic_block_forward.1} parent=0 // pred_fallthru
    _

</llo_original>
